<compile_context>
chip_gen: v6e
topology: v6e:2x2x1
jax: 0.10.0
libtpu: 0.0.40
codegen_flags: <defaults>
</compile_context>

<pallas_src>
import jax
import jax.numpy as jnp
from jax import lax
from jax.experimental import pallas as pl
from jax.experimental.pallas import tpu as pltpu

NUMBER_OF_INPUTS = 4    # CartPole-v0 observation_space.shape[0]
NUMBER_OF_OUTPUTS = 2   # CartPole-v0 action_space.n
HIDDEN_LAYER = 64

_MIN_PALLAS_BATCH = 256     # at/below this, fused XLA is strictly faster
_MIN_PARALLEL_TILE = 1024   # don't split tiles smaller than this for megacore


def _cdiv(a, b):
    return -(-a // b)


def _round_up(a, m):
    return _cdiv(a, m) * m


def _mlp_kernel(x_ref, w1_ref, b1_ref, w2_ref, b2_ref, o_ref):
    # x_ref:  [tb, 4]   native PyTorch layout (any float dtype)
    # w1_ref: [64, 4]   PyTorch linear1.weight layout, grid-resident
    # b1_ref: [1, 64]   compute dtype
    # w2_ref: [2, 64]   PyTorch linear2.weight layout, grid-resident
    # b2_ref: [1, 2]    f32
    # o_ref:  [tb, 2]   logits
    cdt = w1_ref.dtype
    x = x_ref[...].astype(cdt)

    # Layer 1: x @ w1.T -> [tb, 64]. preferred_element_type == compute dtype so
    # with bf16 the bias-add + tanh stay on the bf16 VPU/EUP and the hidden tile
    # is half-sized in VMEM (K = 4, rounding impact negligible for logits).
    h = lax.dot_general(x, w1_ref[...], (((1,), (1,)), ((), ())),
                        preferred_element_type=cdt)
    h = jnp.tanh(h + b1_ref[...])

    # Layer 2: h @ w2.T -> [tb, 2]; always accumulate in f32.
    o = lax.dot_general(h, w2_ref[...], (((1,), (1,)), ((), ())),
                        preferred_element_type=jnp.float32)
    o_ref[...] = (o + b2_ref[...]).astype(o_ref.dtype)


def _pick_tile(batch, block_b):
    """Batch-tile (rows per grid step)."""
    block_b = max(8, (block_b // 8) * 8)
    if batch > block_b:
        return block_b
    if batch >= 2 * _MIN_PARALLEL_TILE:
        # Split mid-sized batches into (at least) two grid steps so the
        # "parallel" batch axis can be sharded across v7x's two TensorCores.
        return min(block_b, _round_up(_cdiv(batch, 2), 8))
    return batch  # single block == full array shape (no (8,128) constraint)


def neural_network_forward(x, w1, b1, w2, b2, *, block_b=8192,
                           compute_dtype=jnp.bfloat16,
                           out_dtype=jnp.float32,
                           vmem_limit_bytes=None,
                           force_pallas=False):
    """Forward pass of NeuralNetwork: Linear(4,64) -> Tanh -> Linear(64,2).

    x:  [B, 4]  (PyTorch input layout; pass bf16 to halve streamed input bytes)
    w1: [64, 4] (PyTorch linear1.weight, [out, in]);  b1: [64]
    w2: [2, 64] (PyTorch linear2.weight);             b2: [2]
    returns [B, 2] logits in out_dtype (no final activation — matches module).
    """
    B = x.shape[0]

    if B <= _MIN_PALLAS_BATCH and not force_pallas:
        # Tiny RL batches: one fused XLA op beats custom-call + DMA overhead.
        out = jnp.tanh(x @ w1.T + b1) @ w2.T + b2
        return out.astype(out_dtype)

    tb = _pick_tile(B, block_b)
    n_blocks = _cdiv(B, tb)  # ragged final block handled by Pallas masking

    # Weights/biases are tiny (<2 KB) and stay VMEM-resident across the grid.
    w1c = w1.astype(compute_dtype)                               # [64, 4]
    w2c = w2.astype(compute_dtype)                               # [2, 64]
    b1c = b1.reshape(1, HIDDEN_LAYER).astype(compute_dtype)      # [1, 64]
    b2c = b2.reshape(1, NUMBER_OF_OUTPUTS).astype(jnp.float32)   # [1, 2]

    if vmem_limit_bytes is None:
        # Blocks whose minor dim (< 128) gets lane-padded to 128 in VMEM.
        lane = 128
        x_buf = tb * lane * x.dtype.itemsize
        o_buf = tb * lane * jnp.dtype(out_dtype).itemsize
        h_buf = tb * lane * jnp.dtype(compute_dtype).itemsize
        est = 2 * x_buf + 2 * o_buf + 4 * h_buf + (1 << 20)
        # Floor above every chip's scoped default (16/32 MiB); cap below v7x's
        # 64 MiB physical at the default block_b (v5e/v6e have 128 MiB).
        vmem_limit_bytes = int(min(max(est, 48 * 2**20), 96 * 2**20))

    out_itemsize = jnp.dtype(out_dtype).itemsize
    flops = 2 * B * (NUMBER_OF_INPUTS * HIDDEN_LAYER
                     + HIDDEN_LAYER * NUMBER_OF_OUTPUTS)
    param_bytes = ((w1c.size + w2c.size + b1c.size) *
                   jnp.dtype(compute_dtype).itemsize + b2c.size * 4)
    bytes_accessed = (x.size * x.dtype.itemsize
                      + B * NUMBER_OF_OUTPUTS * out_itemsize + param_bytes)

    out = pl.pallas_call(
        _mlp_kernel,
        out_shape=jax.ShapeDtypeStruct((B, NUMBER_OF_OUTPUTS), out_dtype),
        grid=(n_blocks,),
        in_specs=[
            # Only x moves with the grid; weights/biases are grid-resident.
            pl.BlockSpec((tb, NUMBER_OF_INPUTS), lambda i: (i, 0)),
            pl.BlockSpec((HIDDEN_LAYER, NUMBER_OF_INPUTS), lambda i: (0, 0)),
            pl.BlockSpec((1, HIDDEN_LAYER), lambda i: (0, 0)),
            pl.BlockSpec((NUMBER_OF_OUTPUTS, HIDDEN_LAYER), lambda i: (0, 0)),
            pl.BlockSpec((1, NUMBER_OF_OUTPUTS), lambda i: (0, 0)),
        ],
        out_specs=pl.BlockSpec((tb, NUMBER_OF_OUTPUTS), lambda i: (i, 0)),
        compiler_params=pltpu.CompilerParams(
            dimension_semantics=("parallel",),      # batch sharded on v7x TCs
            vmem_limit_bytes=vmem_limit_bytes),
        cost_estimate=pl.CostEstimate(
            flops=int(flops),
            transcendentals=int(B * HIDDEN_LAYER),
            bytes_accessed=int(bytes_accessed)),
    )(x, w1c, b1c, w2c, b2c)
    return out


def init_params(key):
    """PyTorch nn.Linear default init (U[-1/sqrt(fan_in), 1/sqrt(fan_in)]),
    stored in PyTorch-native [out_features, in_features] layout."""
    k1, k2, k3, k4 = jax.random.split(key, 4)
    bound1 = 1.0 / jnp.sqrt(jnp.float32(NUMBER_OF_INPUTS))
    bound2 = 1.0 / jnp.sqrt(jnp.float32(HIDDEN_LAYER))
    w1 = jax.random.uniform(k1, (HIDDEN_LAYER, NUMBER_OF_INPUTS), jnp.float32,
                            -bound1, bound1)
    b1 = jax.random.uniform(k2, (HIDDEN_LAYER,), jnp.float32, -bound1, bound1)
    w2 = jax.random.uniform(k3, (NUMBER_OF_OUTPUTS, HIDDEN_LAYER), jnp.float32,
                            -bound2, bound2)
    b2 = jax.random.uniform(k4, (NUMBER_OF_OUTPUTS,), jnp.float32,
                            -bound2, bound2)
    return w1, b1, w2, b2


if __name__ == "__main__":
    key = jax.random.PRNGKey(0)
    kp, k1, k2, k3, k4 = jax.random.split(key, 5)
    w1, b1, w2, b2 = init_params(kp)

    def ref(xx):
        return jnp.tanh(xx @ w1.T + b1) @ w2.T + b2

    # 1) Tiny RL batch -> fused-XLA fallback path (no custom-call overhead).
    x_small = jax.random.normal(k1, (8, NUMBER_OF_INPUTS), jnp.float32)
    o = jax.block_until_ready(neural_network_forward(x_small, w1, b1, w2, b2))
    assert o.shape == (8, NUMBER_OF_OUTPUTS)
    assert jnp.allclose(o, ref(x_small), atol=1e-5, rtol=1e-5)

    # 2) Single-block Pallas path, exact f32 compute (also the v5e setting).
    x_one = jax.random.normal(k2, (256, NUMBER_OF_INPUTS), jnp.float32)
    o = jax.block_until_ready(neural_network_forward(
        x_one, w1, b1, w2, b2, compute_dtype=jnp.float32, force_pallas=True))
    assert jnp.allclose(o, ref(x_one), atol=1e-5, rtol=1e-5)

    # 3) Tiled Pallas path with a ragged final block (no pad copy), f32.
    x_rag = jax.random.normal(k3, (300, NUMBER_OF_INPUTS), jnp.float32)
    o = jax.block_until_ready(neural_network_forward(
        x_rag, w1, b1, w2, b2, block_b=128, compute_dtype=jnp.float32,
        force_pallas=True))
    assert o.shape == (300, NUMBER_OF_OUTPUTS)
    assert jnp.allclose(o, ref(x_rag), atol=1e-5, rtol=1e-5)

    # 4) Default bf16-hidden streaming configuration (large-batch path).
    x_big = jax.random.normal(k4, (512, NUMBER_OF_INPUTS), jnp.float32)
    o = jax.block_until_ready(neural_network_forward(
        x_big, w1, b1, w2, b2, force_pallas=True))
    assert jnp.allclose(o, ref(x_big), atol=5e-2, rtol=5e-2)

    print("KERNEL_OK")
</pallas_src>

<mosaic_0001>
module attributes {stable_mosaic.version = 11 : i64} {
  func.func @_mlp_kernel(%arg0: i32, %arg1: memref<256x4xf32, #tpu.memory_space<vmem>>, %arg2: memref<64x4xf32, #tpu.memory_space<vmem>>, %arg3: memref<1x64xf32, #tpu.memory_space<vmem>>, %arg4: memref<2x64xf32, #tpu.memory_space<vmem>>, %arg5: memref<1x2xf32, #tpu.memory_space<vmem>>, %arg6: memref<256x2xf32, #tpu.memory_space<vmem>>) attributes {dimension_semantics = [#tpu.dimension_semantics<parallel>], iteration_bounds = array<i64: 1>, scalar_prefetch = 0 : i64, scratch_operands = 0 : i64, tpu.core_type = #tpu.core_type<tc>, window_params = [{transform_indices = @transform_0, window_bounds = array<i64: 256, 4>}, {pipeline_mode = #tpu.pipeline_mode<synchronous>, transform_indices = @transform_1, window_bounds = array<i64: 64, 4>}, {pipeline_mode = #tpu.pipeline_mode<synchronous>, transform_indices = @transform_2, window_bounds = array<i64: 1, 64>}, {pipeline_mode = #tpu.pipeline_mode<synchronous>, transform_indices = @transform_3, window_bounds = array<i64: 2, 64>}, {pipeline_mode = #tpu.pipeline_mode<synchronous>, transform_indices = @transform_4, window_bounds = array<i64: 1, 2>}, {transform_indices = @transform_5, window_bounds = array<i64: 256, 2>}]} {
    %c0 = arith.constant 0 : index
    %c0_0 = arith.constant 0 : index
    %0 = vector.load %arg1[%c0, %c0_0] : memref<256x4xf32, #tpu.memory_space<vmem>>, vector<256x4xf32>
    %c0_1 = arith.constant 0 : index
    %c0_2 = arith.constant 0 : index
    %1 = vector.load %arg2[%c0_1, %c0_2] : memref<64x4xf32, #tpu.memory_space<vmem>>, vector<64x4xf32>
    %cst = arith.constant dense<0.000000e+00> : vector<256x64xf32>
    %2 = tpu.matmul %0, %1, %cst {dimension_numbers = #tpu.dot_dimension_numbers<[1], [1], [0], [0], [0, 0, 1, 0], [], []>} : vector<256x4xf32>, vector<64x4xf32>, vector<256x64xf32> -> vector<256x64xf32>
    %c0_3 = arith.constant 0 : index
    %c0_4 = arith.constant 0 : index
    %3 = vector.load %arg3[%c0_3, %c0_4] : memref<1x64xf32, #tpu.memory_space<vmem>>, vector<1x64xf32>
    %4 = vector.broadcast %3 : vector<1x64xf32> to vector<256x64xf32>
    %5 = arith.addf %2, %4 : vector<256x64xf32>
    %6 = math.tanh %5 : vector<256x64xf32>
    %c0_5 = arith.constant 0 : index
    %c0_6 = arith.constant 0 : index
    %7 = vector.load %arg4[%c0_5, %c0_6] : memref<2x64xf32, #tpu.memory_space<vmem>>, vector<2x64xf32>
    %cst_7 = arith.constant dense<0.000000e+00> : vector<256x2xf32>
    %8 = tpu.matmul %6, %7, %cst_7 {dimension_numbers = #tpu.dot_dimension_numbers<[1], [1], [0], [0], [0, 0, 1, 0], [], []>} : vector<256x64xf32>, vector<2x64xf32>, vector<256x2xf32> -> vector<256x2xf32>
    %c0_8 = arith.constant 0 : index
    %c0_9 = arith.constant 0 : index
    %9 = vector.load %arg5[%c0_8, %c0_9] : memref<1x2xf32, #tpu.memory_space<vmem>>, vector<1x2xf32>
    %10 = vector.broadcast %9 : vector<1x2xf32> to vector<256x2xf32>
    %11 = arith.addf %8, %10 : vector<256x2xf32>
    %c0_10 = arith.constant 0 : index
    %c0_11 = arith.constant 0 : index
    %12 = vector.load %arg6[%c0_10, %c0_11] : memref<256x2xf32, #tpu.memory_space<vmem>>, vector<256x2xf32>
    tpu.vector_store %arg6[%c0_10, %c0_11], %11 {strides = array<i32>} : memref<256x2xf32, #tpu.memory_space<vmem>>, vector<256x2xf32>,
    return
  }
  func.func @transform_0(%arg0: i32) -> (i32, i32) {
    %c0_i32 = arith.constant 0 : i32
    %c0_i32_0 = arith.constant 0 : i32
    return %arg0, %c0_i32 : i32, i32
  }
  func.func @transform_1(%arg0: i32) -> (i32, i32) {
    %c0_i32 = arith.constant 0 : i32
    %c0_i32_0 = arith.constant 0 : i32
    %c0_i32_1 = arith.constant 0 : i32
    return %c0_i32, %c0_i32_0 : i32, i32
  }
  func.func @transform_2(%arg0: i32) -> (i32, i32) {
    %c0_i32 = arith.constant 0 : i32
    %c0_i32_0 = arith.constant 0 : i32
    %c0_i32_1 = arith.constant 0 : i32
    return %c0_i32, %c0_i32_0 : i32, i32
  }
  func.func @transform_3(%arg0: i32) -> (i32, i32) {
    %c0_i32 = arith.constant 0 : i32
    %c0_i32_0 = arith.constant 0 : i32
    %c0_i32_1 = arith.constant 0 : i32
    return %c0_i32, %c0_i32_0 : i32, i32
  }
  func.func @transform_4(%arg0: i32) -> (i32, i32) {
    %c0_i32 = arith.constant 0 : i32
    %c0_i32_0 = arith.constant 0 : i32
    %c0_i32_1 = arith.constant 0 : i32
    return %c0_i32, %c0_i32_0 : i32, i32
  }
  func.func @transform_5(%arg0: i32) -> (i32, i32) {
    %c0_i32 = arith.constant 0 : i32
    %c0_i32_0 = arith.constant 0 : i32
    return %arg0, %c0_i32 : i32, i32
  }
}

</mosaic_0001>

<llo_original>
// kernel: tpu_custom_call.1
$region0: #{tpu_custom_call.1}
  #allocation0 [shape = 'u32[]', space=smem, size = 0x4, offset = 0x4, fixed_abs, tag = 'smem constant byte address 0x4 - core index']
  #allocation1 [shape = 'u32[144,128]{1,0:T(1,128)}', space=vmem, size = 0x12000, scoped, tag = 'internal scratch']
  %s0 = inlined_call_operand.vmem [shape: f32[256,4], index: 0, kind: input, shape index: {}]
  %s1 = inlined_call_operand.vmem [shape: f32[64,4], index: 1, kind: input, shape index: {}]
  %s2 = inlined_call_operand.vmem [shape: f32[1,64], index: 2, kind: input, shape index: {}]
  %s3 = inlined_call_operand.vmem [shape: f32[2,64], index: 3, kind: input, shape index: {}]
  %s4 = inlined_call_operand.vmem [shape: f32[1,2], index: 4, kind: input, shape index: {}]
  %s5 = inlined_call_operand.vmem [shape: f32[256,2], index: 5, kind: output, shape index: {}]
  %s6 = sld [smem:[#allocation0]]
  $region30: #{tpu_custom_call.1} parent=0
    _
  %s8 = ssub.s32 1, %s6
  %s9 = scalar_select 0, %s8, %s6
  // Predicated region
  $region2: #{tpu_custom_call.1} parent=0 // pred_check
    _
  $region3: #{tpu_custom_call.1} parent=0 // pred_check_branch
    %11 = sbr.rel (0) target = $region5
  $region4: #{tpu_custom_call.1} parent=0 // pred_region
    _
  $region5: #{tpu_custom_call.1} parent=0 // pred_fallthru
    _
  // Predicated region
  $region6: #{tpu_custom_call.1} parent=0 // pred_check
    _
  $region7: #{tpu_custom_call.1} parent=0 // pred_check_branch
    %13 = sbr.rel (0) target = $region9
  $region8: #{tpu_custom_call.1} parent=0 // pred_region
    _
  $region9: #{tpu_custom_call.1} parent=0 // pred_fallthru
    _
  // Predicated region
  $region10: #{tpu_custom_call.1} parent=0 // pred_check
    _
  $region11: #{tpu_custom_call.1} parent=0 // pred_check_branch
    %15 = sbr.rel (0) target = $region13
  $region12: #{tpu_custom_call.1} parent=0 // pred_region
    _
  $region13: #{tpu_custom_call.1} parent=0 // pred_fallthru
    _
  // Predicated region
  $region14: #{tpu_custom_call.1} parent=0 // pred_check
    _
  $region15: #{tpu_custom_call.1} parent=0 // pred_check_branch
    %17 = sbr.rel (0) target = $region17
  $region16: #{tpu_custom_call.1} parent=0 // pred_region
    _
  $region17: #{tpu_custom_call.1} parent=0 // pred_fallthru
    _
  // Predicated region
  $region18: #{tpu_custom_call.1} parent=0 // pred_check
    _
  $region19: #{tpu_custom_call.1} parent=0 // pred_check_branch
    %19 = sbr.rel (0) target = $region21
  $region20: #{tpu_custom_call.1} parent=0 // pred_region
    _
  $region21: #{tpu_custom_call.1} parent=0 // pred_fallthru
    _
  %v20 = vld [vmem:[%s0] sm:$0xff]
  %v21 = vld [vmem:[%s0 + $0x8] sm:$0xff]
  %v22 = vld [vmem:[%s0 + $0x10] sm:$0xff]
  %v23 = vld [vmem:[%s0 + $0x18] sm:$0xff]
  %v24 = vld [vmem:[%s0 + $0x20] sm:$0xff]
  %v25 = vld [vmem:[%s0 + $0x28] sm:$0xff]
  %v26 = vld [vmem:[%s0 + $0x30] sm:$0xff]
  %v27 = vld [vmem:[%s0 + $0x38] sm:$0xff]
  %v28 = vld [vmem:[%s0 + $0x40] sm:$0xff]
  %v29 = vld [vmem:[%s0 + $0x48] sm:$0xff]
  %v30 = vld [vmem:[%s0 + $0x50] sm:$0xff]
  %v31 = vld [vmem:[%s0 + $0x58] sm:$0xff]
  %v32 = vld [vmem:[%s0 + $0x60] sm:$0xff]
  %v33 = vld [vmem:[%s0 + $0x68] sm:$0xff]
  %v34 = vld [vmem:[%s0 + $0x70] sm:$0xff]
  %v35 = vld [vmem:[%s0 + $0x78] sm:$0xff]
  %v36 = vld [vmem:[%s0 + $0x80] sm:$0xff]
  %v37 = vld [vmem:[%s0 + $0x88] sm:$0xff]
  %v38 = vld [vmem:[%s0 + $0x90] sm:$0xff]
  %v39 = vld [vmem:[%s0 + $0x98] sm:$0xff]
  %v40 = vld [vmem:[%s0 + $0xa0] sm:$0xff]
  %v41 = vld [vmem:[%s0 + $0xa8] sm:$0xff]
  %v42 = vld [vmem:[%s0 + $0xb0] sm:$0xff]
  %v43 = vld [vmem:[%s0 + $0xb8] sm:$0xff]
  %v44 = vld [vmem:[%s0 + $0xc0] sm:$0xff]
  %v45 = vld [vmem:[%s0 + $0xc8] sm:$0xff]
  %v46 = vld [vmem:[%s0 + $0xd0] sm:$0xff]
  %v47 = vld [vmem:[%s0 + $0xd8] sm:$0xff]
  %v48 = vld [vmem:[%s0 + $0xe0] sm:$0xff]
  %v49 = vld [vmem:[%s0 + $0xe8] sm:$0xff]
  %v50 = vld [vmem:[%s0 + $0xf0] sm:$0xff]
  %v51 = vld [vmem:[%s0 + $0xf8] sm:$0xff]
  %v52 = vld [vmem:[%s1] sm:$0xff]
  %v53 = vld [vmem:[%s1 + $0x8] sm:$0xff]
  %v54 = vld [vmem:[%s1 + $0x10] sm:$0xff]
  %v55 = vld [vmem:[%s1 + $0x18] sm:$0xff]
  %v56 = vld [vmem:[%s1 + $0x20] sm:$0xff]
  %v57 = vld [vmem:[%s1 + $0x28] sm:$0xff]
  %v58 = vld [vmem:[%s1 + $0x30] sm:$0xff]
  %v59 = vld [vmem:[%s1 + $0x38] sm:$0xff]
  %v60 = vld [vmem:[%s2] sm:$0x1]
  %v62 = vlaneseq
  %v63 = vshrl.u32 %v62, 7
  %v64 = vsub.s32 0, %v63
  %v65 = vrot.slane %v60, %v64
  %vm67 = vcmask 31744
  %v69 = vsel %vm67, %v20, 0
  %v72 = vsel %vm67, %v21, 0
  %v75 = vsel %vm67, %v22, 0
  %v78 = vsel %vm67, %v23, 0
  %v81 = vsel %vm67, %v24, 0
  %v84 = vsel %vm67, %v25, 0
  %v87 = vsel %vm67, %v26, 0
  %v90 = vsel %vm67, %v27, 0
  %v93 = vsel %vm67, %v28, 0
  %v96 = vsel %vm67, %v29, 0
  %v99 = vsel %vm67, %v30, 0
  %v102 = vsel %vm67, %v31, 0
  %v105 = vsel %vm67, %v32, 0
  %v108 = vsel %vm67, %v33, 0
  %v111 = vsel %vm67, %v34, 0
  %v114 = vsel %vm67, %v35, 0
  %v117 = vsel %vm67, %v36, 0
  %v120 = vsel %vm67, %v37, 0
  %v123 = vsel %vm67, %v38, 0
  %v126 = vsel %vm67, %v39, 0
  %v129 = vsel %vm67, %v40, 0
  %v132 = vsel %vm67, %v41, 0
  %v135 = vsel %vm67, %v42, 0
  %v138 = vsel %vm67, %v43, 0
  %v141 = vsel %vm67, %v44, 0
  %v144 = vsel %vm67, %v45, 0
  %v147 = vsel %vm67, %v46, 0
  %v150 = vsel %vm67, %v47, 0
  %v153 = vsel %vm67, %v48, 0
  %v156 = vsel %vm67, %v49, 0
  %v159 = vsel %vm67, %v50, 0
  %v162 = vsel %vm67, %v51, 0
  %v165 = vsel %vm67, %v52, 0
  %v168 = vsel %vm67, %v53, 0
  %v171 = vsel %vm67, %v54, 0
  %v174 = vsel %vm67, %v55, 0
  %v177 = vsel %vm67, %v56, 0
  %v180 = vsel %vm67, %v57, 0
  %v183 = vsel %vm67, %v58, 0
  %v186 = vsel %vm67, %v59, 0
  %188 = vmatprep.subr.mxu0 0.0
  %189 = vmatpush1.xpose.msra.mxu0 0.0
  %190 = vmatprep.subr.mxu0 0.0
  %191 = vmatpush1.xpose.msra.mxu0 0.0
  %192 = vmatprep.subr.mxu0 0.0
  %193 = vmatpush1.xpose.msra.mxu0 0.0
  %194 = vmatprep.subr.mxu0 0.0
  %195 = vmatpush1.xpose.msra.mxu0 0.0
  %196 = vmatprep.subr.mxu0 0.0
  %197 = vmatpush1.xpose.msra.mxu0 0.0
  %198 = vmatprep.subr.mxu0 0.0
  %199 = vmatpush1.xpose.msra.mxu0 0.0
  %200 = vmatprep.subr.mxu0 0.0
  %201 = vmatpush1.xpose.msra.mxu0 0.0
  %202 = vmatprep.subr.mxu0 0.0
  %203 = vmatpush1.xpose.msra.mxu0 0.0
  %204 = vmatprep.subr.mxu0 0.0
  %205 = vmatpush1.xpose.msra.mxu0 %v186
  %206 = vmatprep.subr.mxu0 0.0
  %207 = vmatpush1.xpose.msra.mxu0 %v183
  %208 = vmatprep.subr.mxu0 0.0
  %209 = vmatpush1.xpose.msra.mxu0 %v180
  %210 = vmatprep.subr.mxu0 0.0
  %211 = vmatpush1.xpose.msra.mxu0 %v177
  %212 = vmatprep.subr.mxu0 0.0
  %213 = vmatpush1.xpose.msra.mxu0 %v174
  %214 = vmatprep.subr.mxu0 0.0
  %215 = vmatpush1.xpose.msra.mxu0 %v171
  %216 = vmatprep.subr.mxu0 0.0
  %217 = vmatpush1.xpose.msra.mxu0 %v168
  %218 = vmatprep.subr.mxu0 0.0
  %219 = vmatpush1.xpose.msra.mxu0 %v165
  %220 = vmatprep.subr.mxu0 0.0
  %221 = vmatpush2.xpose.msra.mxu0 0.0
  %222 = vmatprep.subr.mxu0 0.0
  %223 = vmatpush2.xpose.msra.mxu0 0.0
  %224 = vmatprep.subr.mxu0 0.0
  %225 = vmatpush2.xpose.msra.mxu0 0.0
  %226 = vmatprep.subr.mxu0 0.0
  %227 = vmatpush2.xpose.msra.mxu0 0.0
  %228 = vmatprep.subr.mxu0 0.0
  %229 = vmatpush2.xpose.msra.mxu0 0.0
  %230 = vmatprep.subr.mxu0 0.0
  %231 = vmatpush2.xpose.msra.mxu0 0.0
  %232 = vmatprep.subr.mxu0 0.0
  %233 = vmatpush2.xpose.msra.mxu0 0.0
  %234 = vmatprep.subr.mxu0 0.0
  %235 = vmatpush2.xpose.msra.mxu0 0.0
  %236 = vmatprep.subr.mxu0 0.0
  %237 = vmatpush2.xpose.msra.mxu0 0.0
  %238 = vmatprep.subr.mxu0 0.0
  %239 = vmatpush2.xpose.msra.mxu0 0.0
  %240 = vmatprep.subr.mxu0 0.0
  %241 = vmatpush2.xpose.msra.mxu0 0.0
  %242 = vmatprep.subr.mxu0 0.0
  %243 = vmatpush2.xpose.msra.mxu0 0.0
  %244 = vmatprep.subr.mxu0 0.0
  %245 = vmatpush2.xpose.msra.mxu0 0.0
  %246 = vmatprep.subr.mxu0 0.0
  %247 = vmatpush2.xpose.msra.mxu0 0.0
  %248 = vmatprep.subr.mxu0 0.0
  %249 = vmatpush2.xpose.msra.mxu0 0.0
  %250 = vmatprep.subr.mxu0 0.0
  %251 = vmatpush2.xpose.msra.mxu0 0.0
  %252 = vmatprep.mubr.f32.mxu0 0.0
  %253 = vmatmul.mubr.f32.gmra.mxu0 %v69
  %v254 = vpop.f32.mrf.mxu0
  %v255 = vadd.f32 %v65, %v254
  %v256 = vpop.f32.mrf.mxu0
  %257 = vmatprep.mubr.f32.mxu0 0.0
  %258 = vmatmul.mubr.f32.gmra.mxu0 %v72
  %v259 = vpop.f32.mrf.mxu0
  %v260 = vadd.f32 %v65, %v259
  %v261 = vpop.f32.mrf.mxu0
  %262 = vmatprep.mubr.f32.mxu0 0.0
  %263 = vmatmul.mubr.f32.gmra.mxu0 %v75
  %v264 = vpop.f32.mrf.mxu0
  %v265 = vadd.f32 %v65, %v264
  %v266 = vpop.f32.mrf.mxu0
  %267 = vmatprep.mubr.f32.mxu0 0.0
  %268 = vmatmul.mubr.f32.gmra.mxu0 %v78
  %v269 = vpop.f32.mrf.mxu0
  %v270 = vadd.f32 %v65, %v269
  %v271 = vpop.f32.mrf.mxu0
  %272 = vmatprep.mubr.f32.mxu0 0.0
  %273 = vmatmul.mubr.f32.gmra.mxu0 %v81
  %v274 = vpop.f32.mrf.mxu0
  %v275 = vadd.f32 %v65, %v274
  %v276 = vpop.f32.mrf.mxu0
  %277 = vmatprep.mubr.f32.mxu0 0.0
  %278 = vmatmul.mubr.f32.gmra.mxu0 %v84
  %v279 = vpop.f32.mrf.mxu0
  %v280 = vadd.f32 %v65, %v279
  %v281 = vpop.f32.mrf.mxu0
  %282 = vmatprep.mubr.f32.mxu0 0.0
  %283 = vmatmul.mubr.f32.gmra.mxu0 %v87
  %v284 = vpop.f32.mrf.mxu0
  %v285 = vadd.f32 %v65, %v284
  %v286 = vpop.f32.mrf.mxu0
  %287 = vmatprep.mubr.f32.mxu0 0.0
  %288 = vmatmul.mubr.f32.gmra.mxu0 %v90
  %v289 = vpop.f32.mrf.mxu0
  %v290 = vadd.f32 %v65, %v289
  %v291 = vpop.f32.mrf.mxu0
  %292 = vmatprep.mubr.f32.mxu0 0.0
  %293 = vmatmul.mubr.f32.gmra.mxu0 %v93
  %v294 = vpop.f32.mrf.mxu0
  %v295 = vadd.f32 %v65, %v294
  %v296 = vpop.f32.mrf.mxu0
  %297 = vmatprep.mubr.f32.mxu0 0.0
  %298 = vmatmul.mubr.f32.gmra.mxu0 %v96
  %v299 = vpop.f32.mrf.mxu0
  %v300 = vadd.f32 %v65, %v299
  %v301 = vpop.f32.mrf.mxu0
  %302 = vmatprep.mubr.f32.mxu0 0.0
  %303 = vmatmul.mubr.f32.gmra.mxu0 %v99
  %v304 = vpop.f32.mrf.mxu0
  %v305 = vadd.f32 %v65, %v304
  %v306 = vpop.f32.mrf.mxu0
  %307 = vmatprep.mubr.f32.mxu0 0.0
  %308 = vmatmul.mubr.f32.gmra.mxu0 %v102
  %v309 = vpop.f32.mrf.mxu0
  %v310 = vadd.f32 %v65, %v309
  %v311 = vpop.f32.mrf.mxu0
  %312 = vmatprep.mubr.f32.mxu0 0.0
  %313 = vmatmul.mubr.f32.gmra.mxu0 %v105
  %v314 = vpop.f32.mrf.mxu0
  %v315 = vadd.f32 %v65, %v314
  %v316 = vpop.f32.mrf.mxu0
  %317 = vmatprep.mubr.f32.mxu0 0.0
  %318 = vmatmul.mubr.f32.gmra.mxu0 %v108
  %v319 = vpop.f32.mrf.mxu0
  %v320 = vadd.f32 %v65, %v319
  %v321 = vpop.f32.mrf.mxu0
  %322 = vmatprep.mubr.f32.mxu0 0.0
  %323 = vmatmul.mubr.f32.gmra.mxu0 %v111
  %v324 = vpop.f32.mrf.mxu0
  %v325 = vadd.f32 %v65, %v324
  %v326 = vpop.f32.mrf.mxu0
  %327 = vmatprep.mubr.f32.mxu0 0.0
  %328 = vmatmul.mubr.f32.gmra.mxu0 %v114
  %v329 = vpop.f32.mrf.mxu0
  %v330 = vadd.f32 %v65, %v329
  %v331 = vpop.f32.mrf.mxu0
  %332 = vmatprep.mubr.f32.mxu0 0.0
  %333 = vmatmul.mubr.f32.gmra.mxu0 %v117
  %v334 = vpop.f32.mrf.mxu0
  %v335 = vadd.f32 %v65, %v334
  %v336 = vpop.f32.mrf.mxu0
  %337 = vmatprep.mubr.f32.mxu0 0.0
  %338 = vmatmul.mubr.f32.gmra.mxu0 %v120
  %v339 = vpop.f32.mrf.mxu0
  %v340 = vadd.f32 %v65, %v339
  %v341 = vpop.f32.mrf.mxu0
  %342 = vmatprep.mubr.f32.mxu0 0.0
  %343 = vmatmul.mubr.f32.gmra.mxu0 %v123
  %v344 = vpop.f32.mrf.mxu0
  %v345 = vadd.f32 %v65, %v344
  %v346 = vpop.f32.mrf.mxu0
  %347 = vmatprep.mubr.f32.mxu0 0.0
  %348 = vmatmul.mubr.f32.gmra.mxu0 %v126
  %v349 = vpop.f32.mrf.mxu0
  %v350 = vadd.f32 %v65, %v349
  %v351 = vpop.f32.mrf.mxu0
  %352 = vmatprep.mubr.f32.mxu0 0.0
  %353 = vmatmul.mubr.f32.gmra.mxu0 %v129
  %v354 = vpop.f32.mrf.mxu0
  %v355 = vadd.f32 %v65, %v354
  %v356 = vpop.f32.mrf.mxu0
  %357 = vmatprep.mubr.f32.mxu0 0.0
  %358 = vmatmul.mubr.f32.gmra.mxu0 %v132
  %v359 = vpop.f32.mrf.mxu0
  %v360 = vadd.f32 %v65, %v359
  %v361 = vpop.f32.mrf.mxu0
  %362 = vmatprep.mubr.f32.mxu0 0.0
  %363 = vmatmul.mubr.f32.gmra.mxu0 %v135
  %v364 = vpop.f32.mrf.mxu0
  %v365 = vadd.f32 %v65, %v364
  %v366 = vpop.f32.mrf.mxu0
  %367 = vmatprep.mubr.f32.mxu0 0.0
  %368 = vmatmul.mubr.f32.gmra.mxu0 %v138
  %v369 = vpop.f32.mrf.mxu0
  %v370 = vadd.f32 %v65, %v369
  %v371 = vpop.f32.mrf.mxu0
  %372 = vmatprep.mubr.f32.mxu0 0.0
  %373 = vmatmul.mubr.f32.gmra.mxu0 %v141
  %v374 = vpop.f32.mrf.mxu0
  %v375 = vadd.f32 %v65, %v374
  %v376 = vpop.f32.mrf.mxu0
  %377 = vmatprep.mubr.f32.mxu0 0.0
  %378 = vmatmul.mubr.f32.gmra.mxu0 %v144
  %v379 = vpop.f32.mrf.mxu0
  %v380 = vadd.f32 %v65, %v379
  %v381 = vpop.f32.mrf.mxu0
  %382 = vmatprep.mubr.f32.mxu0 0.0
  %383 = vmatmul.mubr.f32.gmra.mxu0 %v147
  %v384 = vpop.f32.mrf.mxu0
  %v385 = vadd.f32 %v65, %v384
  %v386 = vpop.f32.mrf.mxu0
  %387 = vmatprep.mubr.f32.mxu0 0.0
  %388 = vmatmul.mubr.f32.gmra.mxu0 %v150
  %v389 = vpop.f32.mrf.mxu0
  %v390 = vadd.f32 %v65, %v389
  %v391 = vpop.f32.mrf.mxu0
  %392 = vmatprep.mubr.f32.mxu0 0.0
  %393 = vmatmul.mubr.f32.gmra.mxu0 %v153
  %v394 = vpop.f32.mrf.mxu0
  %v395 = vadd.f32 %v65, %v394
  %v396 = vpop.f32.mrf.mxu0
  %397 = vmatprep.mubr.f32.mxu0 0.0
  %398 = vmatmul.mubr.f32.gmra.mxu0 %v156
  %v399 = vpop.f32.mrf.mxu0
  %v400 = vadd.f32 %v65, %v399
  %v401 = vpop.f32.mrf.mxu0
  %402 = vmatprep.mubr.f32.mxu0 0.0
  %403 = vmatmul.mubr.f32.gmra.mxu0 %v159
  %v404 = vpop.f32.mrf.mxu0
  %v405 = vadd.f32 %v65, %v404
  %v406 = vpop.f32.mrf.mxu0
  %407 = vmatprep.mubr.f32.mxu0 0.0
  %408 = vmatmul.mubr.f32.gmra.mxu0 %v162
  %v409 = vpop.f32.mrf.mxu0
  %v410 = vadd.f32 %v65, %v409
  %v411 = vpop.f32.mrf.mxu0
  %412 = vdwg.mxu0
  %v413 = vtanh.pop %v255
  %v414 = vtanh.pop %v260
  %v415 = vtanh.pop %v265
  %v416 = vtanh.pop %v270
  %v417 = vtanh.pop %v275
  %v418 = vtanh.pop %v280
  %v419 = vtanh.pop %v285
  %v420 = vtanh.pop %v290
  %v421 = vtanh.pop %v295
  %v422 = vtanh.pop %v300
  %v423 = vtanh.pop %v305
  %v424 = vtanh.pop %v310
  %v425 = vtanh.pop %v315
  %v426 = vtanh.pop %v320
  %v427 = vtanh.pop %v325
  %v428 = vtanh.pop %v330
  %v429 = vtanh.pop %v335
  %v430 = vtanh.pop %v340
  %v431 = vtanh.pop %v345
  %v432 = vtanh.pop %v350
  %v433 = vtanh.pop %v355
  %v434 = vtanh.pop %v360
  %v435 = vtanh.pop %v365
  %v436 = vtanh.pop %v370
  %v437 = vtanh.pop %v375
  %v438 = vtanh.pop %v380
  %v439 = vtanh.pop %v385
  %v440 = vtanh.pop %v390
  %v441 = vtanh.pop %v395
  %v442 = vtanh.pop %v400
  %v443 = vtanh.pop %v405
  %v444 = vtanh.pop %v410
  %v445 = vld [vmem:[%s3] sm:$0x3]
  %v446 = vld [vmem:[%s4] sm:$0x1]
  %v448 = vlaneseq
  %v449 = vshrl.u32 %v448, 7
  %v450 = vsub.s32 0, %v449
  %v451 = vrot.slane %v446, %v450
  %vm453 = vcmask 523264
  %v455 = vsel %vm453, %v413, 0
  %v458 = vsel %vm453, %v414, 0
  %v461 = vsel %vm453, %v415, 0
  %v464 = vsel %vm453, %v416, 0
  %v467 = vsel %vm453, %v417, 0
  %v470 = vsel %vm453, %v418, 0
  %v473 = vsel %vm453, %v419, 0
  %v476 = vsel %vm453, %v420, 0
  %v479 = vsel %vm453, %v421, 0
  %v482 = vsel %vm453, %v422, 0
  %v485 = vsel %vm453, %v423, 0
  %v488 = vsel %vm453, %v424, 0
  %v491 = vsel %vm453, %v425, 0
  %v494 = vsel %vm453, %v426, 0
  %v497 = vsel %vm453, %v427, 0
  %v500 = vsel %vm453, %v428, 0
  %v503 = vsel %vm453, %v429, 0
  %v506 = vsel %vm453, %v430, 0
  %v509 = vsel %vm453, %v431, 0
  %v512 = vsel %vm453, %v432, 0
  %v515 = vsel %vm453, %v433, 0
  %v518 = vsel %vm453, %v434, 0
  %v521 = vsel %vm453, %v435, 0
  %v524 = vsel %vm453, %v436, 0
  %v527 = vsel %vm453, %v437, 0
  %v530 = vsel %vm453, %v438, 0
  %v533 = vsel %vm453, %v439, 0
  %v536 = vsel %vm453, %v440, 0
  %v539 = vsel %vm453, %v441, 0
  %v542 = vsel %vm453, %v442, 0
  %v545 = vsel %vm453, %v443, 0
  %v548 = vsel %vm453, %v444, 0
  %v551 = vsel %vm453, %v445, 0
  %553 = vmatprep.subr.mxu0 0.0
  %554 = vmatpush1.xpose.msra.mxu0 0.0
  %555 = vmatprep.subr.mxu0 0.0
  %556 = vmatpush1.xpose.msra.mxu0 0.0
  %557 = vmatprep.subr.mxu0 0.0
  %558 = vmatpush1.xpose.msra.mxu0 0.0
  %559 = vmatprep.subr.mxu0 0.0
  %560 = vmatpush1.xpose.msra.mxu0 0.0
  %561 = vmatprep.subr.mxu0 0.0
  %562 = vmatpush1.xpose.msra.mxu0 0.0
  %563 = vmatprep.subr.mxu0 0.0
  %564 = vmatpush1.xpose.msra.mxu0 0.0
  %565 = vmatprep.subr.mxu0 0.0
  %566 = vmatpush1.xpose.msra.mxu0 0.0
  %567 = vmatprep.subr.mxu0 0.0
  %568 = vmatpush1.xpose.msra.mxu0 0.0
  %569 = vmatprep.subr.mxu0 0.0
  %570 = vmatpush1.xpose.msra.mxu0 0.0
  %571 = vmatprep.subr.mxu0 0.0
  %572 = vmatpush1.xpose.msra.mxu0 0.0
  %573 = vmatprep.subr.mxu0 0.0
  %574 = vmatpush1.xpose.msra.mxu0 0.0
  %575 = vmatprep.subr.mxu0 0.0
  %576 = vmatpush1.xpose.msra.mxu0 0.0
  %577 = vmatprep.subr.mxu0 0.0
  %578 = vmatpush1.xpose.msra.mxu0 0.0
  %579 = vmatprep.subr.mxu0 0.0
  %580 = vmatpush1.xpose.msra.mxu0 0.0
  %581 = vmatprep.subr.mxu0 0.0
  %582 = vmatpush1.xpose.msra.mxu0 0.0
  %583 = vmatprep.subr.mxu0 0.0
  %584 = vmatpush1.xpose.msra.mxu0 %v551
  %585 = vmatprep.subr.mxu0 0.0
  %586 = vmatpush2.xpose.msra.mxu0 0.0
  %587 = vmatprep.subr.mxu0 0.0
  %588 = vmatpush2.xpose.msra.mxu0 0.0
  %589 = vmatprep.subr.mxu0 0.0
  %590 = vmatpush2.xpose.msra.mxu0 0.0
  %591 = vmatprep.subr.mxu0 0.0
  %592 = vmatpush2.xpose.msra.mxu0 0.0
  %593 = vmatprep.subr.mxu0 0.0
  %594 = vmatpush2.xpose.msra.mxu0 0.0
  %595 = vmatprep.subr.mxu0 0.0
  %596 = vmatpush2.xpose.msra.mxu0 0.0
  %597 = vmatprep.subr.mxu0 0.0
  %598 = vmatpush2.xpose.msra.mxu0 0.0
  %599 = vmatprep.subr.mxu0 0.0
  %600 = vmatpush2.xpose.msra.mxu0 0.0
  %601 = vmatprep.subr.mxu0 0.0
  %602 = vmatpush2.xpose.msra.mxu0 0.0
  %603 = vmatprep.subr.mxu0 0.0
  %604 = vmatpush2.xpose.msra.mxu0 0.0
  %605 = vmatprep.subr.mxu0 0.0
  %606 = vmatpush2.xpose.msra.mxu0 0.0
  %607 = vmatprep.subr.mxu0 0.0
  %608 = vmatpush2.xpose.msra.mxu0 0.0
  %609 = vmatprep.subr.mxu0 0.0
  %610 = vmatpush2.xpose.msra.mxu0 0.0
  %611 = vmatprep.subr.mxu0 0.0
  %612 = vmatpush2.xpose.msra.mxu0 0.0
  %613 = vmatprep.subr.mxu0 0.0
  %614 = vmatpush2.xpose.msra.mxu0 0.0
  %615 = vmatprep.subr.mxu0 0.0
  %616 = vmatpush2.xpose.msra.mxu0 0.0
  %617 = vmatprep.mubr.f32.mxu0 0.0
  %618 = vmatmul.mubr.f32.gmra.mxu0 %v455
  %v619 = vpop.f32.mrf.mxu0
  %v620 = vadd.f32 %v451, %v619
  %v621 = vpop.f32.mrf.mxu0
  %622 = vmatprep.mubr.f32.mxu0 0.0
  %623 = vmatmul.mubr.f32.gmra.mxu0 %v458
  %v624 = vpop.f32.mrf.mxu0
  %v625 = vadd.f32 %v451, %v624
  %v626 = vpop.f32.mrf.mxu0
  %627 = vmatprep.mubr.f32.mxu0 0.0
  %628 = vmatmul.mubr.f32.gmra.mxu0 %v461
  %v629 = vpop.f32.mrf.mxu0
  %v630 = vadd.f32 %v451, %v629
  %v631 = vpop.f32.mrf.mxu0
  %632 = vmatprep.mubr.f32.mxu0 0.0
  %633 = vmatmul.mubr.f32.gmra.mxu0 %v464
  %v634 = vpop.f32.mrf.mxu0
  %v635 = vadd.f32 %v451, %v634
  %v636 = vpop.f32.mrf.mxu0
  %637 = vmatprep.mubr.f32.mxu0 0.0
  %638 = vmatmul.mubr.f32.gmra.mxu0 %v467
  %v639 = vpop.f32.mrf.mxu0
  %v640 = vadd.f32 %v451, %v639
  %v641 = vpop.f32.mrf.mxu0
  %642 = vmatprep.mubr.f32.mxu0 0.0
  %643 = vmatmul.mubr.f32.gmra.mxu0 %v470
  %v644 = vpop.f32.mrf.mxu0
  %v645 = vadd.f32 %v451, %v644
  %v646 = vpop.f32.mrf.mxu0
  %647 = vmatprep.mubr.f32.mxu0 0.0
  %648 = vmatmul.mubr.f32.gmra.mxu0 %v473
  %v649 = vpop.f32.mrf.mxu0
  %v650 = vadd.f32 %v451, %v649
  %v651 = vpop.f32.mrf.mxu0
  %652 = vmatprep.mubr.f32.mxu0 0.0
  %653 = vmatmul.mubr.f32.gmra.mxu0 %v476
  %v654 = vpop.f32.mrf.mxu0
  %v655 = vadd.f32 %v451, %v654
  %v656 = vpop.f32.mrf.mxu0
  %657 = vmatprep.mubr.f32.mxu0 0.0
  %658 = vmatmul.mubr.f32.gmra.mxu0 %v479
  %v659 = vpop.f32.mrf.mxu0
  %v660 = vadd.f32 %v451, %v659
  %v661 = vpop.f32.mrf.mxu0
  %662 = vmatprep.mubr.f32.mxu0 0.0
  %663 = vmatmul.mubr.f32.gmra.mxu0 %v482
  %v664 = vpop.f32.mrf.mxu0
  %v665 = vadd.f32 %v451, %v664
  %v666 = vpop.f32.mrf.mxu0
  %667 = vmatprep.mubr.f32.mxu0 0.0
  %668 = vmatmul.mubr.f32.gmra.mxu0 %v485
  %v669 = vpop.f32.mrf.mxu0
  %v670 = vadd.f32 %v451, %v669
  %v671 = vpop.f32.mrf.mxu0
  %672 = vmatprep.mubr.f32.mxu0 0.0
  %673 = vmatmul.mubr.f32.gmra.mxu0 %v488
  %v674 = vpop.f32.mrf.mxu0
  %v675 = vadd.f32 %v451, %v674
  %v676 = vpop.f32.mrf.mxu0
  %677 = vmatprep.mubr.f32.mxu0 0.0
  %678 = vmatmul.mubr.f32.gmra.mxu0 %v491
  %v679 = vpop.f32.mrf.mxu0
  %v680 = vadd.f32 %v451, %v679
  %v681 = vpop.f32.mrf.mxu0
  %682 = vmatprep.mubr.f32.mxu0 0.0
  %683 = vmatmul.mubr.f32.gmra.mxu0 %v494
  %v684 = vpop.f32.mrf.mxu0
  %v685 = vadd.f32 %v451, %v684
  %v686 = vpop.f32.mrf.mxu0
  %687 = vmatprep.mubr.f32.mxu0 0.0
  %688 = vmatmul.mubr.f32.gmra.mxu0 %v497
  %v689 = vpop.f32.mrf.mxu0
  %v690 = vadd.f32 %v451, %v689
  %v691 = vpop.f32.mrf.mxu0
  %692 = vmatprep.mubr.f32.mxu0 0.0
  %693 = vmatmul.mubr.f32.gmra.mxu0 %v500
  %v694 = vpop.f32.mrf.mxu0
  %v695 = vadd.f32 %v451, %v694
  %v696 = vpop.f32.mrf.mxu0
  %697 = vmatprep.mubr.f32.mxu0 0.0
  %698 = vmatmul.mubr.f32.gmra.mxu0 %v503
  %v699 = vpop.f32.mrf.mxu0
  %v700 = vadd.f32 %v451, %v699
  %v701 = vpop.f32.mrf.mxu0
  %702 = vmatprep.mubr.f32.mxu0 0.0
  %703 = vmatmul.mubr.f32.gmra.mxu0 %v506
  %v704 = vpop.f32.mrf.mxu0
  %v705 = vadd.f32 %v451, %v704
  %v706 = vpop.f32.mrf.mxu0
  %707 = vmatprep.mubr.f32.mxu0 0.0
  %708 = vmatmul.mubr.f32.gmra.mxu0 %v509
  %v709 = vpop.f32.mrf.mxu0
  %v710 = vadd.f32 %v451, %v709
  %v711 = vpop.f32.mrf.mxu0
  %712 = vmatprep.mubr.f32.mxu0 0.0
  %713 = vmatmul.mubr.f32.gmra.mxu0 %v512
  %v714 = vpop.f32.mrf.mxu0
  %v715 = vadd.f32 %v451, %v714
  %v716 = vpop.f32.mrf.mxu0
  %717 = vmatprep.mubr.f32.mxu0 0.0
  %718 = vmatmul.mubr.f32.gmra.mxu0 %v515
  %v719 = vpop.f32.mrf.mxu0
  %v720 = vadd.f32 %v451, %v719
  %v721 = vpop.f32.mrf.mxu0
  %722 = vmatprep.mubr.f32.mxu0 0.0
  %723 = vmatmul.mubr.f32.gmra.mxu0 %v518
  %v724 = vpop.f32.mrf.mxu0
  %v725 = vadd.f32 %v451, %v724
  %v726 = vpop.f32.mrf.mxu0
  %727 = vmatprep.mubr.f32.mxu0 0.0
  %728 = vmatmul.mubr.f32.gmra.mxu0 %v521
  %v729 = vpop.f32.mrf.mxu0
  %v730 = vadd.f32 %v451, %v729
  %v731 = vpop.f32.mrf.mxu0
  %732 = vmatprep.mubr.f32.mxu0 0.0
  %733 = vmatmul.mubr.f32.gmra.mxu0 %v524
  %v734 = vpop.f32.mrf.mxu0
  %v735 = vadd.f32 %v451, %v734
  %v736 = vpop.f32.mrf.mxu0
  %737 = vmatprep.mubr.f32.mxu0 0.0
  %738 = vmatmul.mubr.f32.gmra.mxu0 %v527
  %v739 = vpop.f32.mrf.mxu0
  %v740 = vadd.f32 %v451, %v739
  %v741 = vpop.f32.mrf.mxu0
  %742 = vmatprep.mubr.f32.mxu0 0.0
  %743 = vmatmul.mubr.f32.gmra.mxu0 %v530
  %v744 = vpop.f32.mrf.mxu0
  %v745 = vadd.f32 %v451, %v744
  %v746 = vpop.f32.mrf.mxu0
  %747 = vmatprep.mubr.f32.mxu0 0.0
  %748 = vmatmul.mubr.f32.gmra.mxu0 %v533
  %v749 = vpop.f32.mrf.mxu0
  %v750 = vadd.f32 %v451, %v749
  %v751 = vpop.f32.mrf.mxu0
  %752 = vmatprep.mubr.f32.mxu0 0.0
  %753 = vmatmul.mubr.f32.gmra.mxu0 %v536
  %v754 = vpop.f32.mrf.mxu0
  %v755 = vadd.f32 %v451, %v754
  %v756 = vpop.f32.mrf.mxu0
  %757 = vmatprep.mubr.f32.mxu0 0.0
  %758 = vmatmul.mubr.f32.gmra.mxu0 %v539
  %v759 = vpop.f32.mrf.mxu0
  %v760 = vadd.f32 %v451, %v759
  %v761 = vpop.f32.mrf.mxu0
  %762 = vmatprep.mubr.f32.mxu0 0.0
  %763 = vmatmul.mubr.f32.gmra.mxu0 %v542
  %v764 = vpop.f32.mrf.mxu0
  %v765 = vadd.f32 %v451, %v764
  %v766 = vpop.f32.mrf.mxu0
  %767 = vmatprep.mubr.f32.mxu0 0.0
  %768 = vmatmul.mubr.f32.gmra.mxu0 %v545
  %v769 = vpop.f32.mrf.mxu0
  %v770 = vadd.f32 %v451, %v769
  %v771 = vpop.f32.mrf.mxu0
  %772 = vmatprep.mubr.f32.mxu0 0.0
  %773 = vmatmul.mubr.f32.gmra.mxu0 %v548
  %v774 = vpop.f32.mrf.mxu0
  %v775 = vadd.f32 %v451, %v774
  %v776 = vpop.f32.mrf.mxu0
  %777 = vdwg.mxu0
  %vm778 = vcmask 15360
  %779 = vst.msk [vmem:[%s5] sm:$0xff] %vm778, %v620
  %780 = vst.msk [vmem:[%s5 + $0x8] sm:$0xff] %vm778, %v625
  %781 = vst.msk [vmem:[%s5 + $0x10] sm:$0xff] %vm778, %v630
  %782 = vst.msk [vmem:[%s5 + $0x18] sm:$0xff] %vm778, %v635
  %783 = vst.msk [vmem:[%s5 + $0x20] sm:$0xff] %vm778, %v640
  %784 = vst.msk [vmem:[%s5 + $0x28] sm:$0xff] %vm778, %v645
  %785 = vst.msk [vmem:[%s5 + $0x30] sm:$0xff] %vm778, %v650
  %786 = vst.msk [vmem:[%s5 + $0x38] sm:$0xff] %vm778, %v655
  %787 = vst.msk [vmem:[%s5 + $0x40] sm:$0xff] %vm778, %v660
  %788 = vst.msk [vmem:[%s5 + $0x48] sm:$0xff] %vm778, %v665
  %789 = vst.msk [vmem:[%s5 + $0x50] sm:$0xff] %vm778, %v670
  %790 = vst.msk [vmem:[%s5 + $0x58] sm:$0xff] %vm778, %v675
  %791 = vst.msk [vmem:[%s5 + $0x60] sm:$0xff] %vm778, %v680
  %792 = vst.msk [vmem:[%s5 + $0x68] sm:$0xff] %vm778, %v685
  %793 = vst.msk [vmem:[%s5 + $0x70] sm:$0xff] %vm778, %v690
  %794 = vst.msk [vmem:[%s5 + $0x78] sm:$0xff] %vm778, %v695
  %795 = vst.msk [vmem:[%s5 + $0x80] sm:$0xff] %vm778, %v700
  %796 = vst.msk [vmem:[%s5 + $0x88] sm:$0xff] %vm778, %v705
  %797 = vst.msk [vmem:[%s5 + $0x90] sm:$0xff] %vm778, %v710
  %798 = vst.msk [vmem:[%s5 + $0x98] sm:$0xff] %vm778, %v715
  %799 = vst.msk [vmem:[%s5 + $0xa0] sm:$0xff] %vm778, %v720
  %800 = vst.msk [vmem:[%s5 + $0xa8] sm:$0xff] %vm778, %v725
  %801 = vst.msk [vmem:[%s5 + $0xb0] sm:$0xff] %vm778, %v730
  %802 = vst.msk [vmem:[%s5 + $0xb8] sm:$0xff] %vm778, %v735
  %803 = vst.msk [vmem:[%s5 + $0xc0] sm:$0xff] %vm778, %v740
  %804 = vst.msk [vmem:[%s5 + $0xc8] sm:$0xff] %vm778, %v745
  %805 = vst.msk [vmem:[%s5 + $0xd0] sm:$0xff] %vm778, %v750
  %806 = vst.msk [vmem:[%s5 + $0xd8] sm:$0xff] %vm778, %v755
  %807 = vst.msk [vmem:[%s5 + $0xe0] sm:$0xff] %vm778, %v760
  %808 = vst.msk [vmem:[%s5 + $0xe8] sm:$0xff] %vm778, %v765
  %809 = vst.msk [vmem:[%s5 + $0xf0] sm:$0xff] %vm778, %v770
  %810 = vst.msk [vmem:[%s5 + $0xf8] sm:$0xff] %vm778, %v775
  // Predicated region
  $region22: #{tpu_custom_call.1} parent=0 // pred_check
    _
  $region23: #{tpu_custom_call.1} parent=0 // pred_check_branch
    %812 = sbr.rel (0) target = $region25
  $region24: #{tpu_custom_call.1} parent=0 // pred_region
    _
  $region25: #{tpu_custom_call.1} parent=0 // pred_fallthru
    _
  // Predicated region
  $region26: #{tpu_custom_call.1} parent=0 // pred_check
    _
  $region27: #{tpu_custom_call.1} parent=0 // pred_check_branch
    %814 = sbr.rel (0) target = $region29
  $region28: #{tpu_custom_call.1} parent=0 // pred_region
    _
  $region29: #{tpu_custom_call.1} parent=0 // pred_fallthru
    _

</llo_original>
